<compile_context>
chip_gen: v7x
topology: tpu7x:2x2x1
jax: 0.10.0
libtpu: 0.0.40
codegen_flags: <defaults>
</compile_context>

<pallas_src>
import functools

import jax
import jax.numpy as jnp
from jax.experimental import pallas as pl
from jax.experimental.pallas import tpu as pltpu


# ---------------------------------------------------------------------------
# Helpers
# ---------------------------------------------------------------------------
def _round_up(x, m):
    return ((x + m - 1) // m) * m


def _sublane_multiple(dtype):
    # f32 -> 8, bf16 -> 16, int8 -> 32 rows per (sub)lane tile.
    return 8 * max(1, 4 // jnp.dtype(dtype).itemsize)


def _vmem_capacity_bytes():
    try:
        info = pltpu.get_tpu_info()
        cap = getattr(info, "vmem_capacity_bytes", None)
        if cap:
            return int(cap)
    except Exception:
        pass
    return 128 << 20  # v5e / v6e physical VMEM; v7x reports 64 MiB via get_tpu_info


def _choose_n_block(N, per_sample_bytes, budget_bytes):
    """Largest 8-aligned batch block whose double-buffered inputs fit the budget,
    capped so big batches get >=2 (ideally 4+) parallel grid steps (megacore)."""
    cap = max(1, int(budget_bytes // (2 * per_sample_bytes)))
    if cap >= N:
        nb = N
    else:
        nb = min(N, max(8, (cap // 8) * 8))
    if N >= 32:
        nb = min(nb, max(8, (pl.cdiv(N, 4) // 8) * 8))
    elif N >= 16:
        nb = min(nb, max(8, (pl.cdiv(N, 2) // 8) * 8))
    return nb


# ---------------------------------------------------------------------------
# In-kernel reduction (shared by both paths)
# ---------------------------------------------------------------------------
def _reduce_pathway(x, ffmode, T, HW):
    # x: (..., T*HW); lane axis holds the flattened T*H*W slab.
    if ffmode == "tavg_smax":
        # Temporal mean = sum of T static, 128-aligned lane slices (VPU adds,
        # f32 accumulation), then a single lane max (XLU).
        acc = x[..., 0:HW].astype(jnp.float32)
        for t in range(1, T):
            acc = acc + x[..., t * HW:(t + 1) * HW].astype(jnp.float32)
        t_mean = acc * (1.0 / T)                    # (..., HW)
        return jnp.max(t_mean, axis=-1)             # (...,)
    elif ffmode == "ts_avg":
        return jnp.sum(x, axis=-1, dtype=jnp.float32) * (1.0 / (T * HW))
    else:
        raise RuntimeError()


def _fused_pool_kernel(*refs, ffmode, t_sizes, hw_sizes):
    # refs = (x_ref_0, ..., x_ref_{P-1}, o_ref)
    # x_ref_i: (nb, C_i, T_i*H_i*W_i)   sublane=C, lane=T*H*W
    # o_ref  : (nb, sum(C_i))
    *x_refs, o_ref = refs
    outs = []
    for x_ref, T, HW in zip(x_refs, t_sizes, hw_sizes):
        outs.append(_reduce_pathway(x_ref[...], ffmode, T, HW))
    # Single full-width lane-dense store.
    o_ref[...] = jnp.concatenate(outs, axis=-1).astype(o_ref.dtype)


def _single_pathway_kernel(x_ref, o_ref, *, ffmode, T, HW):
    o_ref[...] = _reduce_pathway(x_ref[...], ffmode, T, HW).astype(o_ref.dtype)


# ---------------------------------------------------------------------------
# Large-slab fallback: one pallas_call per pathway with a parallel C-split.
# ---------------------------------------------------------------------------
def _pool_one_pathway(x, ffmode, T, HW, budget_bytes, vmem_limit, out_dtype):
    N, C, L = (int(s) for s in x.shape)
    itemsize = x.dtype.itemsize
    row_bytes = _round_up(L, 128) * itemsize        # one channel row, one sample
    nb = min(N, 8)
    ch_cap = max(1, int(budget_bytes // (2 * nb * row_bytes)))
    if ch_cap >= C:
        cb = C
    else:
        # 128-aligned channel block: lane-dense output store + sublane aligned input.
        cb = min(C, max(128, (ch_cap // 128) * 128))
    # TODO(synk): if even (1, 128, L) exceeds VMEM, additionally split the T*H*W
    # axis with an "arbitrary" reduction grid axis.
    grid = (pl.cdiv(N, nb), pl.cdiv(C, cb))
    kernel = functools.partial(_single_pathway_kernel, ffmode=ffmode, T=T, HW=HW)
    return pl.pallas_call(
        kernel,
        out_shape=jax.ShapeDtypeStruct((N, C), out_dtype),
        grid=grid,
        in_specs=[pl.BlockSpec((nb, cb, L), lambda n, c: (n, c, 0))],
        out_specs=pl.BlockSpec((nb, cb), lambda n, c: (n, c)),
        compiler_params=pltpu.CompilerParams(
            dimension_semantics=("parallel", "parallel"),
            vmem_limit_bytes=vmem_limit,
        ),
    )(x)


# ---------------------------------------------------------------------------
# Module forward
# ---------------------------------------------------------------------------
def head_featextract_fullframe(xs, dim_in, temp_pool_size, spat_pool_size, ffmode):
    """xs: list of NCTHW arrays, one per pathway."""
    num_pathways = len(temp_pool_size)
    assert len(xs) == num_pathways
    N = int(xs[0].shape[0])
    out_dtype = xs[0].dtype

    xs_flat, t_sizes, hw_sizes, channel_sizes = [], [], [], []
    for pi in range(num_pathways):
        x = xs[pi]
        n, C, T, H, W = (int(s) for s in x.shape)
        assert n == N
        if ffmode == "tavg_smax":
            # PyTorch asserts force full temporal mean and full spatial max.
            if temp_pool_size[pi] is not None:
                assert T == temp_pool_size[pi]
            else:
                assert T == 1
            assert H == spat_pool_size[pi] and W == spat_pool_size[pi]
        elif ffmode == "ts_avg":
            tp = 1 if temp_pool_size[pi] is None else temp_pool_size[pi]
            assert T == tp and H == spat_pool_size[pi] and W == spat_pool_size[pi]
        else:
            raise RuntimeError()
        # Free contiguous reshape: NCTHW -> (N, C, T*H*W).
        xs_flat.append(x.reshape(N, C, T * H * W))
        t_sizes.append(T)
        hw_sizes.append(H * W)
        channel_sizes.append(C)

    C_total = sum(channel_sizes)
    assert C_total == sum(dim_in)

    vmem_cap = _vmem_capacity_bytes()
    vmem_limit = int(0.75 * vmem_cap)   # leave headroom for output + compiler scratch
    budget = int(0.40 * vmem_cap)       # budget for the double-buffered inputs

    # Per-sample VMEM footprint including sublane/lane padding.
    per_sample_bytes = 0
    for x in xs_flat:
        itemsize = x.dtype.itemsize
        sub = _sublane_multiple(x.dtype)
        per_sample_bytes += (_round_up(int(x.shape[1]), sub) *
                             _round_up(int(x.shape[2]), 128) * itemsize)

    total_in_bytes = sum(int(x.size) * x.dtype.itemsize for x in xs_flat)
    out_bytes = N * C_total * jnp.dtype(out_dtype).itemsize
    cost = pl.CostEstimate(
        flops=sum(int(x.size) for x in xs_flat),
        transcendentals=0,
        bytes_accessed=total_in_bytes + out_bytes,
    )

    if 2 * min(N, 8) * per_sample_bytes <= budget:
        # -------- fused path: all pathways + concat in one pallas_call --------
        nb = _choose_n_block(N, per_sample_bytes, budget)
        grid = (pl.cdiv(N, nb),)
        in_specs = [
            pl.BlockSpec((nb, int(x.shape[1]), int(x.shape[2])),
                         lambda n: (n, 0, 0))
            for x in xs_flat
        ]
        out_specs = pl.BlockSpec((nb, C_total), lambda n: (n, 0))
        kernel = functools.partial(
            _fused_pool_kernel,
            ffmode=ffmode,
            t_sizes=tuple(t_sizes),
            hw_sizes=tuple(hw_sizes),
        )
        out = pl.pallas_call(
            kernel,
            out_shape=jax.ShapeDtypeStruct((N, C_total), out_dtype),
            grid=grid,
            in_specs=in_specs,
            out_specs=out_specs,
            compiler_params=pltpu.CompilerParams(
                dimension_semantics=("parallel",),
                vmem_limit_bytes=vmem_limit,
            ),
            cost_estimate=cost,
        )(*xs_flat)
    else:
        # -------- giant-slab fallback: per-pathway calls with parallel C split ----
        outs = [
            _pool_one_pathway(x, ffmode, T, HW, budget, vmem_limit, out_dtype)
            for x, T, HW in zip(xs_flat, t_sizes, hw_sizes)
        ]
        out = jnp.concatenate(outs, axis=1)

    return {"fullframe": out}


# ---------------------------------------------------------------------------
# Pure-JAX reference (mirrors the PyTorch forward) for verification
# ---------------------------------------------------------------------------
def _reference(xs, dim_in, temp_pool_size, spat_pool_size, ffmode):
    outs = []
    for pi in range(len(temp_pool_size)):
        x = xs[pi].astype(jnp.float32)           # (N, C, T, H, W)
        if ffmode == "tavg_smax":
            out = jnp.mean(x, axis=2)            # temporal avg -> (N, C, H, W)
            out = jnp.max(out, axis=(2, 3))      # spatial max  -> (N, C)
        elif ffmode == "ts_avg":
            out = jnp.mean(x, axis=(2, 3, 4))    # -> (N, C)
        else:
            raise RuntimeError()
        outs.append(out.astype(xs[pi].dtype))
    x = jnp.concatenate(outs, axis=1)
    assert x.shape[-1] == sum(dim_in)
    return {"fullframe": x}


# ---------------------------------------------------------------------------
# Main
# ---------------------------------------------------------------------------
if __name__ == "__main__":
    key = jax.random.PRNGKey(0)
    k0, k1 = jax.random.split(key)

    # Two pathways (slowfast-style): dim_in = (32, 16)
    N = 2
    dim_in = (32, 16)
    temp_pool_size = (8, 4)
    spat_pool_size = (16, 16)

    x0 = jax.random.normal(k0, (N, dim_in[0], temp_pool_size[0], 16, 16), jnp.float32)
    x1 = jax.random.normal(k1, (N, dim_in[1], temp_pool_size[1], 16, 16), jnp.float32)
    xs = [x0, x1]

    ok = True
    for ffmode in ("tavg_smax", "ts_avg"):
        out = head_featextract_fullframe(xs, dim_in, temp_pool_size, spat_pool_size, ffmode)
        ref = _reference(xs, dim_in, temp_pool_size, spat_pool_size, ffmode)
        got = jax.block_until_ready(out["fullframe"])
        exp = jax.block_until_ready(ref["fullframe"])
        assert got.shape == (N, sum(dim_in)), got.shape
        if not jnp.allclose(got, exp, atol=1e-5, rtol=1e-5):
            ok = False

    if ok:
        print("KERNEL_OK")
</pallas_src>

<mosaic_0001>
module attributes {stable_mosaic.version = 11 : i64} {
  func.func @_fused_pool_kernel(%arg0: i32, %arg1: memref<2x32x2048xf32, #tpu.memory_space<vmem>>, %arg2: memref<2x16x1024xf32, #tpu.memory_space<vmem>>, %arg3: memref<2x48xf32, #tpu.memory_space<vmem>>) attributes {dimension_semantics = [#tpu.dimension_semantics<parallel>], iteration_bounds = array<i64: 1>, scalar_prefetch = 0 : i64, scratch_operands = 0 : i64, tpu.core_type = #tpu.core_type<tc>, window_params = [{transform_indices = @transform_0, window_bounds = array<i64: 2, 32, 2048>}, {transform_indices = @transform_1, window_bounds = array<i64: 2, 16, 1024>}, {transform_indices = @transform_2, window_bounds = array<i64: 2, 48>}]} {
    %c0 = arith.constant 0 : index
    %c0_0 = arith.constant 0 : index
    %c0_1 = arith.constant 0 : index
    %0 = vector.load %arg1[%c0, %c0_0, %c0_1] : memref<2x32x2048xf32, #tpu.memory_space<vmem>>, vector<2x32x2048xf32>
    %1 = vector.extract_strided_slice %0 {offsets = [0, 0, 0], sizes = [2, 32, 256], strides = [1, 1, 1]} : vector<2x32x2048xf32> to vector<2x32x256xf32>
    %2 = vector.extract_strided_slice %0 {offsets = [0, 0, 256], sizes = [2, 32, 256], strides = [1, 1, 1]} : vector<2x32x2048xf32> to vector<2x32x256xf32>
    %3 = arith.addf %1, %2 : vector<2x32x256xf32>
    %4 = vector.extract_strided_slice %0 {offsets = [0, 0, 512], sizes = [2, 32, 256], strides = [1, 1, 1]} : vector<2x32x2048xf32> to vector<2x32x256xf32>
    %5 = arith.addf %3, %4 : vector<2x32x256xf32>
    %6 = vector.extract_strided_slice %0 {offsets = [0, 0, 768], sizes = [2, 32, 256], strides = [1, 1, 1]} : vector<2x32x2048xf32> to vector<2x32x256xf32>
    %7 = arith.addf %5, %6 : vector<2x32x256xf32>
    %8 = vector.extract_strided_slice %0 {offsets = [0, 0, 1024], sizes = [2, 32, 256], strides = [1, 1, 1]} : vector<2x32x2048xf32> to vector<2x32x256xf32>
    %9 = arith.addf %7, %8 : vector<2x32x256xf32>
    %10 = vector.extract_strided_slice %0 {offsets = [0, 0, 1280], sizes = [2, 32, 256], strides = [1, 1, 1]} : vector<2x32x2048xf32> to vector<2x32x256xf32>
    %11 = arith.addf %9, %10 : vector<2x32x256xf32>
    %12 = vector.extract_strided_slice %0 {offsets = [0, 0, 1536], sizes = [2, 32, 256], strides = [1, 1, 1]} : vector<2x32x2048xf32> to vector<2x32x256xf32>
    %13 = arith.addf %11, %12 : vector<2x32x256xf32>
    %14 = vector.extract_strided_slice %0 {offsets = [0, 0, 1792], sizes = [2, 32, 256], strides = [1, 1, 1]} : vector<2x32x2048xf32> to vector<2x32x256xf32>
    %15 = arith.addf %13, %14 : vector<2x32x256xf32>
    %cst = arith.constant 1.250000e-01 : f32
    %16 = vector.broadcast %cst : f32 to vector<2x32x256xf32>
    %17 = arith.mulf %15, %16 : vector<2x32x256xf32>
    %cst_2 = arith.constant dense<0xFF800000> : vector<2x32xf32>
    %18 = vector.multi_reduction <maximumf>, %17, %cst_2 [2] : vector<2x32x256xf32> to vector<2x32xf32>
    %c0_3 = arith.constant 0 : index
    %c0_4 = arith.constant 0 : index
    %c0_5 = arith.constant 0 : index
    %19 = vector.load %arg2[%c0_3, %c0_4, %c0_5] : memref<2x16x1024xf32, #tpu.memory_space<vmem>>, vector<2x16x1024xf32>
    %20 = vector.extract_strided_slice %19 {offsets = [0, 0, 0], sizes = [2, 16, 256], strides = [1, 1, 1]} : vector<2x16x1024xf32> to vector<2x16x256xf32>
    %21 = vector.extract_strided_slice %19 {offsets = [0, 0, 256], sizes = [2, 16, 256], strides = [1, 1, 1]} : vector<2x16x1024xf32> to vector<2x16x256xf32>
    %22 = arith.addf %20, %21 : vector<2x16x256xf32>
    %23 = vector.extract_strided_slice %19 {offsets = [0, 0, 512], sizes = [2, 16, 256], strides = [1, 1, 1]} : vector<2x16x1024xf32> to vector<2x16x256xf32>
    %24 = arith.addf %22, %23 : vector<2x16x256xf32>
    %25 = vector.extract_strided_slice %19 {offsets = [0, 0, 768], sizes = [2, 16, 256], strides = [1, 1, 1]} : vector<2x16x1024xf32> to vector<2x16x256xf32>
    %26 = arith.addf %24, %25 : vector<2x16x256xf32>
    %cst_6 = arith.constant 2.500000e-01 : f32
    %27 = vector.broadcast %cst_6 : f32 to vector<2x16x256xf32>
    %28 = arith.mulf %26, %27 : vector<2x16x256xf32>
    %cst_7 = arith.constant dense<0xFF800000> : vector<2x16xf32>
    %29 = vector.multi_reduction <maximumf>, %28, %cst_7 [2] : vector<2x16x256xf32> to vector<2x16xf32>
    %30 = tpu.concatenate %18, %29 in 1 : vector<2x32xf32>, vector<2x16xf32> -> vector<2x48xf32>
    %c0_8 = arith.constant 0 : index
    %c0_9 = arith.constant 0 : index
    %31 = vector.load %arg3[%c0_8, %c0_9] : memref<2x48xf32, #tpu.memory_space<vmem>>, vector<2x48xf32>
    tpu.vector_store %arg3[%c0_8, %c0_9], %30 {strides = array<i32>} : memref<2x48xf32, #tpu.memory_space<vmem>>, vector<2x48xf32>,
    return
  }
  func.func @transform_0(%arg0: i32) -> (i32, i32, i32) {
    %c0_i32 = arith.constant 0 : i32
    %c0_i32_0 = arith.constant 0 : i32
    %c0_i32_1 = arith.constant 0 : i32
    return %arg0, %c0_i32, %c0_i32_0 : i32, i32, i32
  }
  func.func @transform_1(%arg0: i32) -> (i32, i32, i32) {
    %c0_i32 = arith.constant 0 : i32
    %c0_i32_0 = arith.constant 0 : i32
    %c0_i32_1 = arith.constant 0 : i32
    return %arg0, %c0_i32, %c0_i32_0 : i32, i32, i32
  }
  func.func @transform_2(%arg0: i32) -> (i32, i32) {
    %c0_i32 = arith.constant 0 : i32
    %c0_i32_0 = arith.constant 0 : i32
    return %arg0, %c0_i32 : i32, i32
  }
}

</mosaic_0001>

<llo_original>
// kernel: tpu_custom_call.1
$region0: #{tpu_custom_call.1}
  #allocation0 [shape = 'u32[]', space=smem, size = 0x4, offset = 0x4, fixed_abs, tag = 'smem constant byte address 0x4 - core index']
  #allocation1 [shape = 'u32[144,128]{1,0:T(1,128)}', space=vmem, size = 0x12000, scoped, tag = 'internal scratch']
  %s0 = inlined_call_operand.hbm [shape: f32[2,32,2048], index: 0, kind: input, shape index: {}]
  %s1 = inlined_call_operand.hbm [shape: f32[2,16,1024], index: 1, kind: input, shape index: {}]
  %s2 = inlined_call_operand.hbm [shape: f32[2,48], index: 2, kind: output, shape index: {}]
  %s3 = sld [smem:[#allocation0]]
  $region26: #{tpu_custom_call.1} parent=0
    _
  %s5 = ssub.s32 1, %s3
  %s6 = scalar_select 0, %s5, %s3
  $region1: #{tpu_custom_call.1} parent=0
    #allocation2 [shape = 'u8[524288]{0}', space=vmem, size = 0x80000, scoped, tag = 'input window, operand 0, single buffered']
    #allocation3 [shape = 's32[1]{0}', space=sflag, size = 0x4, scoped, tag = 'scoped memory for tpu_custom_call.1']
    #allocation4 [shape = 's32[1]{0}', space=sflag, size = 0x4, scoped, tag = 'scoped memory for tpu_custom_call.1']
    #allocation5 [shape = 'u8[131072]{0}', space=vmem, size = 0x20000, scoped, tag = 'input window, operand 1, single buffered']
    #allocation6 [shape = 's32[1]{0}', space=sflag, size = 0x4, scoped, tag = 'scoped memory for tpu_custom_call.1']
    #allocation7 [shape = 'u8[1024]{0}', space=vmem, size = 0x400, scoped, tag = 'output window, operand 0, single buffered']
    %7 = vsyncpa [#allocation3], 0
    %8 = vsyncpa [#allocation6], 0
    %9 = vsyncpa [#allocation4], 0
    // Predicated region
    $region2: #{tpu_custom_call.1} parent=1 // pred_check
      _
    $region3: #{tpu_custom_call.1} parent=1 // pred_check_branch
      %11 = sbr.rel (0) target = $region5
    $region4: #{tpu_custom_call.1} parent=1 // pred_region
      %s13 = ssub.s32 16384, 16384
      %14 = vsyncadd [#allocation3], %s13
      %s15 = sshll.u32 [#allocation2], 4
      %s16 = int_to_ptr.vmem [resolvable:$true] %s15
      %21 = dma.hbm_to_vmem [thread:$0]  %s0, 16384, %s16, [#allocation3], 2048, 2048, 128
    $region5: #{tpu_custom_call.1} parent=1 // pred_fallthru
      _
    // Predicated region
    $region6: #{tpu_custom_call.1} parent=1 // pred_check
      _
    $region7: #{tpu_custom_call.1} parent=1 // pred_check_branch
      %23 = sbr.rel (0) target = $region9
    $region8: #{tpu_custom_call.1} parent=1 // pred_region
      %s25 = ssub.s32 4096, 4096
      %26 = vsyncadd [#allocation6], %s25
      %s27 = sshll.u32 [#allocation5], 4
      %s28 = int_to_ptr.vmem [resolvable:$true] %s27
      %33 = dma.hbm_to_vmem [thread:$0]  %s1, 4096, %s28, [#allocation6], 1024, 1024, 64
    $region9: #{tpu_custom_call.1} parent=1 // pred_fallthru
      _
    // Predicated region
    $region10: #{tpu_custom_call.1} parent=1 // pred_check
      _
    $region11: #{tpu_custom_call.1} parent=1 // pred_check_branch
      %35 = sbr.rel (0) target = $region13
    $region12: #{tpu_custom_call.1} parent=1 // pred_region
      %36 = dma.done [#allocation3], 16384
    $region13: #{tpu_custom_call.1} parent=1 // pred_fallthru
      _
    // Predicated region
    $region14: #{tpu_custom_call.1} parent=1 // pred_check
      _
    $region15: #{tpu_custom_call.1} parent=1 // pred_check_branch
      %38 = sbr.rel (0) target = $region17
    $region16: #{tpu_custom_call.1} parent=1 // pred_region
      %39 = dma.done [#allocation6], 4096
    $region17: #{tpu_custom_call.1} parent=1 // pred_fallthru
      _
    %v40 = vld [vmem:[#allocation2] sm:$0xff]
    %v41 = vld [vmem:[#allocation2 + $0x8] sm:$0xff]
    %v42 = vld [vmem:[#allocation2 + $0x10] sm:$0xff]
    %v43 = vld [vmem:[#allocation2 + $0x18] sm:$0xff]
    %v44 = vld [vmem:[#allocation2 + $0x20] sm:$0xff]
    %v45 = vld [vmem:[#allocation2 + $0x28] sm:$0xff]
    %v46 = vld [vmem:[#allocation2 + $0x30] sm:$0xff]
    %v47 = vld [vmem:[#allocation2 + $0x38] sm:$0xff]
    %v48 = vld [vmem:[#allocation2 + $0x40] sm:$0xff]
    %v49 = vld [vmem:[#allocation2 + $0x48] sm:$0xff]
    %v50 = vld [vmem:[#allocation2 + $0x50] sm:$0xff]
    %v51 = vld [vmem:[#allocation2 + $0x58] sm:$0xff]
    %v52 = vld [vmem:[#allocation2 + $0x60] sm:$0xff]
    %v53 = vld [vmem:[#allocation2 + $0x68] sm:$0xff]
    %v54 = vld [vmem:[#allocation2 + $0x70] sm:$0xff]
    %v55 = vld [vmem:[#allocation2 + $0x78] sm:$0xff]
    %v56 = vld [vmem:[#allocation2 + $0x80] sm:$0xff]
    %v57 = vld [vmem:[#allocation2 + $0x88] sm:$0xff]
    %v58 = vld [vmem:[#allocation2 + $0x90] sm:$0xff]
    %v59 = vld [vmem:[#allocation2 + $0x98] sm:$0xff]
    %v60 = vld [vmem:[#allocation2 + $0xa0] sm:$0xff]
    %v61 = vld [vmem:[#allocation2 + $0xa8] sm:$0xff]
    %v62 = vld [vmem:[#allocation2 + $0xb0] sm:$0xff]
    %v63 = vld [vmem:[#allocation2 + $0xb8] sm:$0xff]
    %v64 = vld [vmem:[#allocation2 + $0xc0] sm:$0xff]
    %v65 = vld [vmem:[#allocation2 + $0xc8] sm:$0xff]
    %v66 = vld [vmem:[#allocation2 + $0xd0] sm:$0xff]
    %v67 = vld [vmem:[#allocation2 + $0xd8] sm:$0xff]
    %v68 = vld [vmem:[#allocation2 + $0xe0] sm:$0xff]
    %v69 = vld [vmem:[#allocation2 + $0xe8] sm:$0xff]
    %v70 = vld [vmem:[#allocation2 + $0xf0] sm:$0xff]
    %v71 = vld [vmem:[#allocation2 + $0xf8] sm:$0xff]
    %v72 = vld [vmem:[#allocation2 + $0x100] sm:$0xff]
    %v73 = vld [vmem:[#allocation2 + $0x108] sm:$0xff]
    %v74 = vld [vmem:[#allocation2 + $0x110] sm:$0xff]
    %v75 = vld [vmem:[#allocation2 + $0x118] sm:$0xff]
    %v76 = vld [vmem:[#allocation2 + $0x120] sm:$0xff]
    %v77 = vld [vmem:[#allocation2 + $0x128] sm:$0xff]
    %v78 = vld [vmem:[#allocation2 + $0x130] sm:$0xff]
    %v79 = vld [vmem:[#allocation2 + $0x138] sm:$0xff]
    %v80 = vld [vmem:[#allocation2 + $0x140] sm:$0xff]
    %v81 = vld [vmem:[#allocation2 + $0x148] sm:$0xff]
    %v82 = vld [vmem:[#allocation2 + $0x150] sm:$0xff]
    %v83 = vld [vmem:[#allocation2 + $0x158] sm:$0xff]
    %v84 = vld [vmem:[#allocation2 + $0x160] sm:$0xff]
    %v85 = vld [vmem:[#allocation2 + $0x168] sm:$0xff]
    %v86 = vld [vmem:[#allocation2 + $0x170] sm:$0xff]
    %v87 = vld [vmem:[#allocation2 + $0x178] sm:$0xff]
    %v88 = vld [vmem:[#allocation2 + $0x180] sm:$0xff]
    %v89 = vld [vmem:[#allocation2 + $0x188] sm:$0xff]
    %v90 = vld [vmem:[#allocation2 + $0x190] sm:$0xff]
    %v91 = vld [vmem:[#allocation2 + $0x198] sm:$0xff]
    %v92 = vld [vmem:[#allocation2 + $0x1a0] sm:$0xff]
    %v93 = vld [vmem:[#allocation2 + $0x1a8] sm:$0xff]
    %v94 = vld [vmem:[#allocation2 + $0x1b0] sm:$0xff]
    %v95 = vld [vmem:[#allocation2 + $0x1b8] sm:$0xff]
    %v96 = vld [vmem:[#allocation2 + $0x1c0] sm:$0xff]
    %v97 = vld [vmem:[#allocation2 + $0x1c8] sm:$0xff]
    %v98 = vld [vmem:[#allocation2 + $0x1d0] sm:$0xff]
    %v99 = vld [vmem:[#allocation2 + $0x1d8] sm:$0xff]
    %v100 = vld [vmem:[#allocation2 + $0x1e0] sm:$0xff]
    %v101 = vld [vmem:[#allocation2 + $0x1e8] sm:$0xff]
    %v102 = vld [vmem:[#allocation2 + $0x1f0] sm:$0xff]
    %v103 = vld [vmem:[#allocation2 + $0x1f8] sm:$0xff]
    %v104 = vld [vmem:[#allocation2 + $0x200] sm:$0xff]
    %v105 = vld [vmem:[#allocation2 + $0x208] sm:$0xff]
    %v106 = vld [vmem:[#allocation2 + $0x210] sm:$0xff]
    %v107 = vld [vmem:[#allocation2 + $0x218] sm:$0xff]
    %v108 = vld [vmem:[#allocation2 + $0x220] sm:$0xff]
    %v109 = vld [vmem:[#allocation2 + $0x228] sm:$0xff]
    %v110 = vld [vmem:[#allocation2 + $0x230] sm:$0xff]
    %v111 = vld [vmem:[#allocation2 + $0x238] sm:$0xff]
    %v112 = vld [vmem:[#allocation2 + $0x240] sm:$0xff]
    %v113 = vld [vmem:[#allocation2 + $0x248] sm:$0xff]
    %v114 = vld [vmem:[#allocation2 + $0x250] sm:$0xff]
    %v115 = vld [vmem:[#allocation2 + $0x258] sm:$0xff]
    %v116 = vld [vmem:[#allocation2 + $0x260] sm:$0xff]
    %v117 = vld [vmem:[#allocation2 + $0x268] sm:$0xff]
    %v118 = vld [vmem:[#allocation2 + $0x270] sm:$0xff]
    %v119 = vld [vmem:[#allocation2 + $0x278] sm:$0xff]
    %v120 = vld [vmem:[#allocation2 + $0x280] sm:$0xff]
    %v121 = vld [vmem:[#allocation2 + $0x288] sm:$0xff]
    %v122 = vld [vmem:[#allocation2 + $0x290] sm:$0xff]
    %v123 = vld [vmem:[#allocation2 + $0x298] sm:$0xff]
    %v124 = vld [vmem:[#allocation2 + $0x2a0] sm:$0xff]
    %v125 = vld [vmem:[#allocation2 + $0x2a8] sm:$0xff]
    %v126 = vld [vmem:[#allocation2 + $0x2b0] sm:$0xff]
    %v127 = vld [vmem:[#allocation2 + $0x2b8] sm:$0xff]
    %v128 = vld [vmem:[#allocation2 + $0x2c0] sm:$0xff]
    %v129 = vld [vmem:[#allocation2 + $0x2c8] sm:$0xff]
    %v130 = vld [vmem:[#allocation2 + $0x2d0] sm:$0xff]
    %v131 = vld [vmem:[#allocation2 + $0x2d8] sm:$0xff]
    %v132 = vld [vmem:[#allocation2 + $0x2e0] sm:$0xff]
    %v133 = vld [vmem:[#allocation2 + $0x2e8] sm:$0xff]
    %v134 = vld [vmem:[#allocation2 + $0x2f0] sm:$0xff]
    %v135 = vld [vmem:[#allocation2 + $0x2f8] sm:$0xff]
    %v136 = vld [vmem:[#allocation2 + $0x300] sm:$0xff]
    %v137 = vld [vmem:[#allocation2 + $0x308] sm:$0xff]
    %v138 = vld [vmem:[#allocation2 + $0x310] sm:$0xff]
    %v139 = vld [vmem:[#allocation2 + $0x318] sm:$0xff]
    %v140 = vld [vmem:[#allocation2 + $0x320] sm:$0xff]
    %v141 = vld [vmem:[#allocation2 + $0x328] sm:$0xff]
    %v142 = vld [vmem:[#allocation2 + $0x330] sm:$0xff]
    %v143 = vld [vmem:[#allocation2 + $0x338] sm:$0xff]
    %v144 = vld [vmem:[#allocation2 + $0x340] sm:$0xff]
    %v145 = vld [vmem:[#allocation2 + $0x348] sm:$0xff]
    %v146 = vld [vmem:[#allocation2 + $0x350] sm:$0xff]
    %v147 = vld [vmem:[#allocation2 + $0x358] sm:$0xff]
    %v148 = vld [vmem:[#allocation2 + $0x360] sm:$0xff]
    %v149 = vld [vmem:[#allocation2 + $0x368] sm:$0xff]
    %v150 = vld [vmem:[#allocation2 + $0x370] sm:$0xff]
    %v151 = vld [vmem:[#allocation2 + $0x378] sm:$0xff]
    %v152 = vld [vmem:[#allocation2 + $0x380] sm:$0xff]
    %v153 = vld [vmem:[#allocation2 + $0x388] sm:$0xff]
    %v154 = vld [vmem:[#allocation2 + $0x390] sm:$0xff]
    %v155 = vld [vmem:[#allocation2 + $0x398] sm:$0xff]
    %v156 = vld [vmem:[#allocation2 + $0x3a0] sm:$0xff]
    %v157 = vld [vmem:[#allocation2 + $0x3a8] sm:$0xff]
    %v158 = vld [vmem:[#allocation2 + $0x3b0] sm:$0xff]
    %v159 = vld [vmem:[#allocation2 + $0x3b8] sm:$0xff]
    %v160 = vld [vmem:[#allocation2 + $0x3c0] sm:$0xff]
    %v161 = vld [vmem:[#allocation2 + $0x3c8] sm:$0xff]
    %v162 = vld [vmem:[#allocation2 + $0x3d0] sm:$0xff]
    %v163 = vld [vmem:[#allocation2 + $0x3d8] sm:$0xff]
    %v164 = vld [vmem:[#allocation2 + $0x3e0] sm:$0xff]
    %v165 = vld [vmem:[#allocation2 + $0x3e8] sm:$0xff]
    %v166 = vld [vmem:[#allocation2 + $0x3f0] sm:$0xff]
    %v167 = vld [vmem:[#allocation2 + $0x3f8] sm:$0xff]
    %v168 = vadd.f32 %v40, %v42
    %v169 = vadd.f32 %v41, %v43
    %v170 = vadd.f32 %v56, %v58
    %v171 = vadd.f32 %v57, %v59
    %v172 = vadd.f32 %v72, %v74
    %v173 = vadd.f32 %v73, %v75
    %v174 = vadd.f32 %v88, %v90
    %v175 = vadd.f32 %v89, %v91
    %v176 = vadd.f32 %v104, %v106
    %v177 = vadd.f32 %v105, %v107
    %v178 = vadd.f32 %v120, %v122
    %v179 = vadd.f32 %v121, %v123
    %v180 = vadd.f32 %v136, %v138
    %v181 = vadd.f32 %v137, %v139
    %v182 = vadd.f32 %v152, %v154
    %v183 = vadd.f32 %v153, %v155
    %v184 = vadd.f32 %v168, %v44
    %v185 = vadd.f32 %v169, %v45
    %v186 = vadd.f32 %v170, %v60
    %v187 = vadd.f32 %v171, %v61
    %v188 = vadd.f32 %v172, %v76
    %v189 = vadd.f32 %v173, %v77
    %v190 = vadd.f32 %v174, %v92
    %v191 = vadd.f32 %v175, %v93
    %v192 = vadd.f32 %v176, %v108
    %v193 = vadd.f32 %v177, %v109
    %v194 = vadd.f32 %v178, %v124
    %v195 = vadd.f32 %v179, %v125
    %v196 = vadd.f32 %v180, %v140
    %v197 = vadd.f32 %v181, %v141
    %v198 = vadd.f32 %v182, %v156
    %v199 = vadd.f32 %v183, %v157
    %v200 = vadd.f32 %v184, %v46
    %v201 = vadd.f32 %v185, %v47
    %v202 = vadd.f32 %v186, %v62
    %v203 = vadd.f32 %v187, %v63
    %v204 = vadd.f32 %v188, %v78
    %v205 = vadd.f32 %v189, %v79
    %v206 = vadd.f32 %v190, %v94
    %v207 = vadd.f32 %v191, %v95
    %v208 = vadd.f32 %v192, %v110
    %v209 = vadd.f32 %v193, %v111
    %v210 = vadd.f32 %v194, %v126
    %v211 = vadd.f32 %v195, %v127
    %v212 = vadd.f32 %v196, %v142
    %v213 = vadd.f32 %v197, %v143
    %v214 = vadd.f32 %v198, %v158
    %v215 = vadd.f32 %v199, %v159
    %v216 = vadd.f32 %v200, %v48
    %v217 = vadd.f32 %v201, %v49
    %v218 = vadd.f32 %v202, %v64
    %v219 = vadd.f32 %v203, %v65
    %v220 = vadd.f32 %v204, %v80
    %v221 = vadd.f32 %v205, %v81
    %v222 = vadd.f32 %v206, %v96
    %v223 = vadd.f32 %v207, %v97
    %v224 = vadd.f32 %v208, %v112
    %v225 = vadd.f32 %v209, %v113
    %v226 = vadd.f32 %v210, %v128
    %v227 = vadd.f32 %v211, %v129
    %v228 = vadd.f32 %v212, %v144
    %v229 = vadd.f32 %v213, %v145
    %v230 = vadd.f32 %v214, %v160
    %v231 = vadd.f32 %v215, %v161
    %v232 = vadd.f32 %v216, %v50
    %v233 = vadd.f32 %v217, %v51
    %v234 = vadd.f32 %v218, %v66
    %v235 = vadd.f32 %v219, %v67
    %v236 = vadd.f32 %v220, %v82
    %v237 = vadd.f32 %v221, %v83
    %v238 = vadd.f32 %v222, %v98
    %v239 = vadd.f32 %v223, %v99
    %v240 = vadd.f32 %v224, %v114
    %v241 = vadd.f32 %v225, %v115
    %v242 = vadd.f32 %v226, %v130
    %v243 = vadd.f32 %v227, %v131
    %v244 = vadd.f32 %v228, %v146
    %v245 = vadd.f32 %v229, %v147
    %v246 = vadd.f32 %v230, %v162
    %v247 = vadd.f32 %v231, %v163
    %v248 = vadd.f32 %v232, %v52
    %v249 = vadd.f32 %v233, %v53
    %v250 = vadd.f32 %v234, %v68
    %v251 = vadd.f32 %v235, %v69
    %v252 = vadd.f32 %v236, %v84
    %v253 = vadd.f32 %v237, %v85
    %v254 = vadd.f32 %v238, %v100
    %v255 = vadd.f32 %v239, %v101
    %v256 = vadd.f32 %v240, %v116
    %v257 = vadd.f32 %v241, %v117
    %v258 = vadd.f32 %v242, %v132
    %v259 = vadd.f32 %v243, %v133
    %v260 = vadd.f32 %v244, %v148
    %v261 = vadd.f32 %v245, %v149
    %v262 = vadd.f32 %v246, %v164
    %v263 = vadd.f32 %v247, %v165
    %v264 = vadd.f32 %v248, %v54
    %v265 = vadd.f32 %v249, %v55
    %v266 = vadd.f32 %v250, %v70
    %v267 = vadd.f32 %v251, %v71
    %v268 = vadd.f32 %v252, %v86
    %v269 = vadd.f32 %v253, %v87
    %v270 = vadd.f32 %v254, %v102
    %v271 = vadd.f32 %v255, %v103
    %v272 = vadd.f32 %v256, %v118
    %v273 = vadd.f32 %v257, %v119
    %v274 = vadd.f32 %v258, %v134
    %v275 = vadd.f32 %v259, %v135
    %v276 = vadd.f32 %v260, %v150
    %v277 = vadd.f32 %v261, %v151
    %v278 = vadd.f32 %v262, %v166
    %v279 = vadd.f32 %v263, %v167
    %v280 = vmul.f32 %v264, 0.125
    %v281 = vmul.f32 %v265, 0.125
    %v282 = vmul.f32 %v266, 0.125
    %v283 = vmul.f32 %v267, 0.125
    %v284 = vmul.f32 %v268, 0.125
    %v285 = vmul.f32 %v269, 0.125
    %v286 = vmul.f32 %v270, 0.125
    %v287 = vmul.f32 %v271, 0.125
    %v288 = vmul.f32 %v272, 0.125
    %v289 = vmul.f32 %v273, 0.125
    %v290 = vmul.f32 %v274, 0.125
    %v291 = vmul.f32 %v275, 0.125
    %v292 = vmul.f32 %v276, 0.125
    %v293 = vmul.f32 %v277, 0.125
    %v294 = vmul.f32 %v278, 0.125
    %v295 = vmul.f32 %v279, 0.125
    %v296 = vmax.f32 %v280, %v281
    %297 = vmax.xlane.f32.xlu0 %v296
    %v298 = vpop.xlane.xlu0 %297
    %v299 = vmax.f32 %v282, %v283
    %300 = vmax.xlane.f32.xlu0 %v299
    %v301 = vpop.xlane.xlu0 %300
    %v302 = vmax.f32 %v284, %v285
    %303 = vmax.xlane.f32.xlu0 %v302
    %v304 = vpop.xlane.xlu0 %303
    %v305 = vmax.f32 %v286, %v287
    %306 = vmax.xlane.f32.xlu0 %v305
    %v307 = vpop.xlane.xlu0 %306
    %v308 = vmax.f32 %v288, %v289
    %309 = vmax.xlane.f32.xlu0 %v308
    %v310 = vpop.xlane.xlu0 %309
    %v311 = vmax.f32 %v290, %v291
    %312 = vmax.xlane.f32.xlu0 %v311
    %v313 = vpop.xlane.xlu0 %312
    %v314 = vmax.f32 %v292, %v293
    %315 = vmax.xlane.f32.xlu0 %v314
    %v316 = vpop.xlane.xlu0 %315
    %v317 = vmax.f32 %v294, %v295
    %318 = vmax.xlane.f32.xlu0 %v317
    %v319 = vpop.xlane.xlu0 %318
    %v320 = vld [vmem:[#allocation5] sm:$0xff]
    %v321 = vld [vmem:[#allocation5 + $0x8] sm:$0xff]
    %v322 = vld [vmem:[#allocation5 + $0x10] sm:$0xff]
    %v323 = vld [vmem:[#allocation5 + $0x18] sm:$0xff]
    %v324 = vld [vmem:[#allocation5 + $0x20] sm:$0xff]
    %v325 = vld [vmem:[#allocation5 + $0x28] sm:$0xff]
    %v326 = vld [vmem:[#allocation5 + $0x30] sm:$0xff]
    %v327 = vld [vmem:[#allocation5 + $0x38] sm:$0xff]
    %v328 = vld [vmem:[#allocation5 + $0x40] sm:$0xff]
    %v329 = vld [vmem:[#allocation5 + $0x48] sm:$0xff]
    %v330 = vld [vmem:[#allocation5 + $0x50] sm:$0xff]
    %v331 = vld [vmem:[#allocation5 + $0x58] sm:$0xff]
    %v332 = vld [vmem:[#allocation5 + $0x60] sm:$0xff]
    %v333 = vld [vmem:[#allocation5 + $0x68] sm:$0xff]
    %v334 = vld [vmem:[#allocation5 + $0x70] sm:$0xff]
    %v335 = vld [vmem:[#allocation5 + $0x78] sm:$0xff]
    %v336 = vld [vmem:[#allocation5 + $0x80] sm:$0xff]
    %v337 = vld [vmem:[#allocation5 + $0x88] sm:$0xff]
    %v338 = vld [vmem:[#allocation5 + $0x90] sm:$0xff]
    %v339 = vld [vmem:[#allocation5 + $0x98] sm:$0xff]
    %v340 = vld [vmem:[#allocation5 + $0xa0] sm:$0xff]
    %v341 = vld [vmem:[#allocation5 + $0xa8] sm:$0xff]
    %v342 = vld [vmem:[#allocation5 + $0xb0] sm:$0xff]
    %v343 = vld [vmem:[#allocation5 + $0xb8] sm:$0xff]
    %v344 = vld [vmem:[#allocation5 + $0xc0] sm:$0xff]
    %v345 = vld [vmem:[#allocation5 + $0xc8] sm:$0xff]
    %v346 = vld [vmem:[#allocation5 + $0xd0] sm:$0xff]
    %v347 = vld [vmem:[#allocation5 + $0xd8] sm:$0xff]
    %v348 = vld [vmem:[#allocation5 + $0xe0] sm:$0xff]
    %v349 = vld [vmem:[#allocation5 + $0xe8] sm:$0xff]
    %v350 = vld [vmem:[#allocation5 + $0xf0] sm:$0xff]
    %v351 = vld [vmem:[#allocation5 + $0xf8] sm:$0xff]
    %v352 = vadd.f32 %v320, %v322
    %v353 = vadd.f32 %v321, %v323
    %v354 = vadd.f32 %v328, %v330
    %v355 = vadd.f32 %v329, %v331
    %v356 = vadd.f32 %v336, %v338
    %v357 = vadd.f32 %v337, %v339
    %v358 = vadd.f32 %v344, %v346
    %v359 = vadd.f32 %v345, %v347
    %v360 = vadd.f32 %v352, %v324
    %v361 = vadd.f32 %v353, %v325
    %v362 = vadd.f32 %v354, %v332
    %v363 = vadd.f32 %v355, %v333
    %v364 = vadd.f32 %v356, %v340
    %v365 = vadd.f32 %v357, %v341
    %v366 = vadd.f32 %v358, %v348
    %v367 = vadd.f32 %v359, %v349
    %v368 = vadd.f32 %v360, %v326
    %v369 = vadd.f32 %v361, %v327
    %v370 = vadd.f32 %v362, %v334
    %v371 = vadd.f32 %v363, %v335
    %v372 = vadd.f32 %v364, %v342
    %v373 = vadd.f32 %v365, %v343
    %v374 = vadd.f32 %v366, %v350
    %v375 = vadd.f32 %v367, %v351
    %v376 = vmul.f32 %v368, 0.25
    %v377 = vmul.f32 %v369, 0.25
    %v378 = vmul.f32 %v370, 0.25
    %v379 = vmul.f32 %v371, 0.25
    %v380 = vmul.f32 %v372, 0.25
    %v381 = vmul.f32 %v373, 0.25
    %v382 = vmul.f32 %v374, 0.25
    %v383 = vmul.f32 %v375, 0.25
    %v384 = vmax.f32 %v376, %v377
    %385 = vmax.xlane.f32.xlu0 %v384
    %v386 = vpop.xlane.xlu0 %385
    %v387 = vmax.f32 %v378, %v379
    %388 = vmax.xlane.f32.xlu0 %v387
    %v389 = vpop.xlane.xlu0 %388
    %v390 = vmax.f32 %v380, %v381
    %391 = vmax.xlane.f32.xlu0 %v390
    %v392 = vpop.xlane.xlu0 %391
    %v393 = vmax.f32 %v382, %v383
    %394 = vmax.xlane.f32.xlu0 %v393
    %v395 = vpop.xlane.xlu0 %394
    %v404 = vlaneseq
    %v405 = vand.u32 %v404, 127
    %v406 = vlaneseq
    %v407 = vshrl.u32 %v406, 7
    %v408 = vsub.s32 %v405, %v407
    %v409 = vrot.slane %v298, %v408
    %v410 = vadd.s32 %v405, 4294967288
    %v411 = vlaneseq
    %v412 = vshrl.u32 %v411, 7
    %v413 = vsub.s32 %v410, %v412
    %v414 = vrot.slane %v301, %v413
    %vm415 = vcmask 130112
    %v416 = vsel %vm415, %v414, %v409
    %v417 = vadd.s32 %v405, 4294967280
    %v418 = vlaneseq
    %v419 = vshrl.u32 %v418, 7
    %v420 = vsub.s32 %v417, %v419
    %v421 = vrot.slane %v304, %v420
    %vm422 = vcmask 195712
    %v423 = vsel %vm422, %v421, %v416
    %v424 = vadd.s32 %v405, 4294967272
    %v425 = vlaneseq
    %v426 = vshrl.u32 %v425, 7
    %v427 = vsub.s32 %v424, %v426
    %v428 = vrot.slane %v307, %v427
    %vm429 = vcmask 261312
    %v430 = vsel %vm429, %v428, %v423
    %v431 = vlaneseq
    %v432 = vshrl.u32 %v431, 7
    %v433 = vsub.s32 %v405, %v432
    %v434 = vrot.slane %v310, %v433
    %v435 = vlaneseq
    %v436 = vshrl.u32 %v435, 7
    %v437 = vsub.s32 %v410, %v436
    %v438 = vrot.slane %v313, %v437
    %v439 = vsel %vm415, %v438, %v434
    %v440 = vlaneseq
    %v441 = vshrl.u32 %v440, 7
    %v442 = vsub.s32 %v417, %v441
    %v443 = vrot.slane %v316, %v442
    %v444 = vsel %vm422, %v443, %v439
    %v445 = vlaneseq
    %v446 = vshrl.u32 %v445, 7
    %v447 = vsub.s32 %v424, %v446
    %v448 = vrot.slane %v319, %v447
    %v449 = vsel %vm429, %v448, %v444
    %vm450 = vcmask 1041409
    %v451 = vsel %vm450, %v449, %v430
    %v457 = vadd.s32 %v405, 4294967264
    %v458 = vlaneseq
    %v459 = vshrl.u32 %v458, 7
    %v460 = vsub.s32 %v457, %v459
    %v461 = vrot.slane %v386, %v460
    %v462 = vadd.s32 %v405, 4294967256
    %v463 = vlaneseq
    %v464 = vshrl.u32 %v463, 7
    %v465 = vsub.s32 %v462, %v464
    %v466 = vrot.slane %v389, %v465
    %vm467 = vcmask 392512
    %v468 = vsel %vm467, %v466, %v461
    %v469 = vlaneseq
    %v470 = vshrl.u32 %v469, 7
    %v471 = vsub.s32 %v457, %v470
    %v472 = vrot.slane %v392, %v471
    %v473 = vlaneseq
    %v474 = vshrl.u32 %v473, 7
    %v475 = vsub.s32 %v462, %v474
    %v476 = vrot.slane %v395, %v475
    %v477 = vsel %vm467, %v476, %v472
    %v478 = vsel %vm450, %v477, %v468
    %vm480 = vcmask 261120
    %v481 = vsel %vm480, %v451, %v478
    %vm482 = vcmask 386048
    %483 = vst.msk [vmem:[#allocation7] sm:$0x3] %vm482, %v481
    // Predicated region
    $region18: #{tpu_custom_call.1} parent=1 // pred_check
      _
    $region19: #{tpu_custom_call.1} parent=1 // pred_check_branch
      %485 = sbr.rel (0) target = $region21
    $region20: #{tpu_custom_call.1} parent=1 // pred_region
      %s487 = ssub.s32 32, 32
      %488 = vsyncadd [#allocation4], %s487
      %s490 = sshll.u32 [#allocation7], 4
      %s491 = int_to_ptr.vmem [resolvable:$true] %s490
      %493 = dma.vmem_to_hbm [thread:$0]  %s491, 32, %s2, [#allocation4]
    $region21: #{tpu_custom_call.1} parent=1 // pred_fallthru
      _
    // Predicated region
    $region22: #{tpu_custom_call.1} parent=1 // pred_check
      _
    $region23: #{tpu_custom_call.1} parent=1 // pred_check_branch
      %495 = sbr.rel (0) target = $region25
    $region24: #{tpu_custom_call.1} parent=1 // pred_region
      %496 = dma.done [#allocation4], 32
    $region25: #{tpu_custom_call.1} parent=1 // pred_fallthru
      _
    %497 = vsyncpa [#allocation3], 1
    %498 = vsyncpa [#allocation6], 1
    %499 = vsyncpa [#allocation4], 1

</llo_original>
